<compile_context>
chip_gen: v7x
topology: tpu7x:2x2x1
jax: 0.10.0
libtpu: 0.0.40
codegen_flags: <defaults>
</compile_context>

<pallas_src>
import functools

import jax
import jax.numpy as jnp
from jax.experimental import pallas as pl
from jax.experimental.pallas import tpu as pltpu


def _round_up(x: int, m: int) -> int:
    return ((x + m - 1) // m) * m


def _critic_kernel(s_ref, a_ref, w1s_ref, w1a_ref, b1_ref,
                   w2_ref, b2_ref, w3_ref, b3_ref, o_ref):
    cdt = w1s_ref.dtype  # MXU-input dtype (bf16 by default); accumulation is f32
    s = s_ref[...].astype(cdt)
    a = a_ref[...].astype(cdt)

    # Layer 1 -- concat fused:  x @ W1 == state @ W1[:Ds] + action @ W1[Ds:]
    h1 = (jnp.dot(s, w1s_ref[...], preferred_element_type=jnp.float32)
          + jnp.dot(a, w1a_ref[...], preferred_element_type=jnp.float32)
          + b1_ref[...])
    h1 = jnp.maximum(h1, 0.0)

    # Layer 2
    h2 = (jnp.dot(h1.astype(cdt), w2_ref[...], preferred_element_type=jnp.float32)
          + b2_ref[...])
    h2 = jnp.maximum(h2, 0.0)

    # Layer 3 (no activation)
    out = (jnp.dot(h2.astype(cdt), w3_ref[...], preferred_element_type=jnp.float32)
           + b3_ref[...])
    o_ref[...] = out.astype(o_ref.dtype)


def critic_forward(state, action, params, *, batch_tile: int = 512):
    """CriticNetwork forward pass in a single batch-tiled pallas_call.

    params = (w1, b1, w2, b2, w3, b3); weights are [in_features, out_features]
    (transposed from PyTorch's [out, in]), weights may be bf16, biases are f32.
    """
    w1, b1, w2, b2, w3, b3 = params
    batch, state_dim = state.shape
    action_dim = action.shape[1]
    hidden = w1.shape[1]
    assert w1.shape[0] == state_dim + action_dim

    # Split W1 so the state/action concat happens inside the kernel.
    w1_s = w1[:state_dim]
    w1_a = w1[state_dim:]

    # Batch tiling: tile must be a multiple of 8 sublanes; zero-pad the batch
    # to a whole number of tiles (padded rows give valid values, sliced off).
    assert batch_tile % 8 == 0
    tb = min(batch_tile, _round_up(batch, 8))
    padded = _round_up(batch, tb)
    if padded != batch:
        pad = padded - batch
        state = jnp.pad(state, ((0, pad), (0, 0)))
        action = jnp.pad(action, ((0, pad), (0, 0)))
    n_tiles = padded // tb

    # VMEM budget (sized to fit v7x's 64 MiB physical VMEM with headroom).
    w_bytes = jnp.dtype(w1.dtype).itemsize
    act_bytes = 4
    weight_bytes = (((state_dim + action_dim) * hidden + hidden * hidden + hidden) * w_bytes
                    + (2 * hidden + 1) * 4)                      # resident weights + biases
    tile_bytes = (2 * tb * (state_dim + action_dim) * act_bytes  # double-buffered inputs
                  + 2 * tb * 1 * act_bytes                       # double-buffered output
                  + 2 * tb * hidden * act_bytes)                 # h1 / h2 intermediates
    vmem_limit = int(min(max(2 * (tile_bytes + weight_bytes), 16 << 20), 48 << 20))

    flops = int(2 * padded * ((state_dim + action_dim) * hidden + hidden * hidden + hidden))
    bytes_accessed = int(padded * (state_dim + action_dim + 1) * act_bytes + weight_bytes)
    cost = pl.CostEstimate(flops=flops, transcendentals=0,
                           bytes_accessed=bytes_accessed)

    def resident(arr):
        # Full-array block with constant index_map -> stays VMEM-resident
        # across batch tiles (fetched from HBM exactly once).
        return pl.BlockSpec(arr.shape, lambda i: (0, 0))

    in_specs = [
        pl.BlockSpec((tb, state_dim), lambda i: (i, 0)),
        pl.BlockSpec((tb, action_dim), lambda i: (i, 0)),
        resident(w1_s), resident(w1_a), resident(b1),
        resident(w2), resident(b2),
        resident(w3), resident(b3),
    ]
    out_spec = pl.BlockSpec((tb, 1), lambda i: (i, 0))

    out = pl.pallas_call(
        _critic_kernel,
        out_shape=jax.ShapeDtypeStruct((padded, 1), jnp.float32),
        grid=(n_tiles,),
        in_specs=in_specs,
        out_specs=out_spec,
        compiler_params=pltpu.CompilerParams(
            dimension_semantics=("parallel",),   # megacore sharding on v7x
            vmem_limit_bytes=vmem_limit,
        ),
        cost_estimate=cost,
    )(state, action, w1_s, w1_a, b1, w2, b2, w3, b3)

    return out[:batch]


def init_params(key, nb_inputs, nb_hidden, weight_dtype=jnp.bfloat16):
    """PyTorch-Linear-style init (uniform +/- 1/sqrt(fan_in)); bf16 weights, f32 biases."""
    def linear(key, fan_in, fan_out):
        kw, kb = jax.random.split(key)
        bound = 1.0 / float(fan_in) ** 0.5
        w = jax.random.uniform(kw, (fan_in, fan_out), jnp.float32, -bound, bound)
        b = jax.random.uniform(kb, (1, fan_out), jnp.float32, -bound, bound)
        return w.astype(weight_dtype), b

    k1, k2, k3 = jax.random.split(key, 3)
    w1, b1 = linear(k1, nb_inputs, nb_hidden)
    w2, b2 = linear(k2, nb_hidden, nb_hidden)
    w3, b3 = linear(k3, nb_hidden, 1)
    return (w1, b1, w2, b2, w3, b3)


def _reference_forward(state, action, params):
    """Pure-JAX reference with the same dtypes (bf16 weights, f32 accumulation)."""
    w1, b1, w2, b2, w3, b3 = params
    cdt = w1.dtype
    x = jnp.concatenate([state, action], axis=1).astype(cdt)
    h1 = jnp.maximum(jnp.dot(x, w1, preferred_element_type=jnp.float32) + b1, 0.0)
    h2 = jnp.maximum(jnp.dot(h1.astype(cdt), w2, preferred_element_type=jnp.float32) + b2, 0.0)
    return jnp.dot(h2.astype(cdt), w3, preferred_element_type=jnp.float32) + b3


if __name__ == "__main__":
    batch = 2
    state_dim = 6
    action_dim = 2
    nb_inputs = state_dim + action_dim  # concat([state, action], dim=1)
    nb_hidden = 32

    key = jax.random.PRNGKey(0)
    kp, ks, ka = jax.random.split(key, 3)

    params = init_params(kp, nb_inputs, nb_hidden)
    state = jax.random.normal(ks, (batch, state_dim), jnp.float32)
    action = jax.random.normal(ka, (batch, action_dim), jnp.float32)

    fwd = jax.jit(functools.partial(critic_forward, batch_tile=512))
    out = fwd(state, action, params)
    out = jax.block_until_ready(out)

    ref = _reference_forward(state, action, params)
    assert out.shape == (batch, 1), out.shape
    assert jnp.allclose(out, ref, atol=1e-3, rtol=1e-3), (out, ref)

    print("KERNEL_OK")
</pallas_src>

<mosaic_0001>
module attributes {stable_mosaic.version = 11 : i64} {
  func.func @_critic_kernel(%arg0: i32, %arg1: memref<8x6xf32, #tpu.memory_space<vmem>>, %arg2: memref<8x2xf32, #tpu.memory_space<vmem>>, %arg3: memref<6x32xbf16, #tpu.memory_space<vmem>>, %arg4: memref<2x32xbf16, #tpu.memory_space<vmem>>, %arg5: memref<1x32xf32, #tpu.memory_space<vmem>>, %arg6: memref<32x32xbf16, #tpu.memory_space<vmem>>, %arg7: memref<1x32xf32, #tpu.memory_space<vmem>>, %arg8: memref<32x1xbf16, #tpu.memory_space<vmem>>, %arg9: memref<1x1xf32, #tpu.memory_space<vmem>>, %arg10: memref<8x1xf32, #tpu.memory_space<vmem>>) attributes {dimension_semantics = [#tpu.dimension_semantics<parallel>], iteration_bounds = array<i64: 1>, scalar_prefetch = 0 : i64, scratch_operands = 0 : i64, tpu.core_type = #tpu.core_type<tc>, window_params = [{transform_indices = @transform_0, window_bounds = array<i64: 8, 6>}, {transform_indices = @transform_1, window_bounds = array<i64: 8, 2>}, {pipeline_mode = #tpu.pipeline_mode<synchronous>, transform_indices = @transform_2, window_bounds = array<i64: 6, 32>}, {pipeline_mode = #tpu.pipeline_mode<synchronous>, transform_indices = @transform_3, window_bounds = array<i64: 2, 32>}, {pipeline_mode = #tpu.pipeline_mode<synchronous>, transform_indices = @transform_4, window_bounds = array<i64: 1, 32>}, {pipeline_mode = #tpu.pipeline_mode<synchronous>, transform_indices = @transform_5, window_bounds = array<i64: 32, 32>}, {pipeline_mode = #tpu.pipeline_mode<synchronous>, transform_indices = @transform_6, window_bounds = array<i64: 1, 32>}, {pipeline_mode = #tpu.pipeline_mode<synchronous>, transform_indices = @transform_7, window_bounds = array<i64: 32, 1>}, {pipeline_mode = #tpu.pipeline_mode<synchronous>, transform_indices = @transform_8, window_bounds = array<i64: 1, 1>}, {transform_indices = @transform_9, window_bounds = array<i64: 8, 1>}]} {
    %c0 = arith.constant 0 : index
    %c0_0 = arith.constant 0 : index
    %0 = vector.load %arg1[%c0, %c0_0] : memref<8x6xf32, #tpu.memory_space<vmem>>, vector<8x6xf32>
    %1 = arith.truncf %0 : vector<8x6xf32> to vector<8x6xbf16>
    %c0_1 = arith.constant 0 : index
    %c0_2 = arith.constant 0 : index
    %2 = vector.load %arg2[%c0_1, %c0_2] : memref<8x2xf32, #tpu.memory_space<vmem>>, vector<8x2xf32>
    %3 = arith.truncf %2 : vector<8x2xf32> to vector<8x2xbf16>
    %c0_3 = arith.constant 0 : index
    %c0_4 = arith.constant 0 : index
    %4 = vector.load %arg3[%c0_3, %c0_4] : memref<6x32xbf16, #tpu.memory_space<vmem>>, vector<6x32xbf16>
    %cst = arith.constant dense<0.000000e+00> : vector<8x32xf32>
    %5 = tpu.matmul %1, %4, %cst {dimension_numbers = #tpu.dot_dimension_numbers<[1], [0], [0], [1], [0, 0, 1, 1], [], []>} : vector<8x6xbf16>, vector<6x32xbf16>, vector<8x32xf32> -> vector<8x32xf32>
    %c0_5 = arith.constant 0 : index
    %c0_6 = arith.constant 0 : index
    %6 = vector.load %arg4[%c0_5, %c0_6] : memref<2x32xbf16, #tpu.memory_space<vmem>>, vector<2x32xbf16>
    %cst_7 = arith.constant dense<0.000000e+00> : vector<8x32xf32>
    %7 = tpu.matmul %3, %6, %cst_7 {dimension_numbers = #tpu.dot_dimension_numbers<[1], [0], [0], [1], [0, 0, 1, 1], [], []>} : vector<8x2xbf16>, vector<2x32xbf16>, vector<8x32xf32> -> vector<8x32xf32>
    %8 = arith.addf %5, %7 : vector<8x32xf32>
    %c0_8 = arith.constant 0 : index
    %c0_9 = arith.constant 0 : index
    %9 = vector.load %arg5[%c0_8, %c0_9] : memref<1x32xf32, #tpu.memory_space<vmem>>, vector<1x32xf32>
    %10 = vector.broadcast %9 : vector<1x32xf32> to vector<8x32xf32>
    %11 = arith.addf %8, %10 : vector<8x32xf32>
    %cst_10 = arith.constant 0.000000e+00 : f32
    %12 = vector.broadcast %cst_10 : f32 to vector<8x32xf32>
    %13 = arith.maximumf %11, %12 : vector<8x32xf32>
    %14 = arith.truncf %13 : vector<8x32xf32> to vector<8x32xbf16>
    %c0_11 = arith.constant 0 : index
    %c0_12 = arith.constant 0 : index
    %15 = vector.load %arg6[%c0_11, %c0_12] : memref<32x32xbf16, #tpu.memory_space<vmem>>, vector<32x32xbf16>
    %cst_13 = arith.constant dense<0.000000e+00> : vector<8x32xf32>
    %16 = tpu.matmul %14, %15, %cst_13 {dimension_numbers = #tpu.dot_dimension_numbers<[1], [0], [0], [1], [0, 0, 1, 1], [], []>} : vector<8x32xbf16>, vector<32x32xbf16>, vector<8x32xf32> -> vector<8x32xf32>
    %c0_14 = arith.constant 0 : index
    %c0_15 = arith.constant 0 : index
    %17 = vector.load %arg7[%c0_14, %c0_15] : memref<1x32xf32, #tpu.memory_space<vmem>>, vector<1x32xf32>
    %18 = vector.broadcast %17 : vector<1x32xf32> to vector<8x32xf32>
    %19 = arith.addf %16, %18 : vector<8x32xf32>
    %cst_16 = arith.constant 0.000000e+00 : f32
    %20 = vector.broadcast %cst_16 : f32 to vector<8x32xf32>
    %21 = arith.maximumf %19, %20 : vector<8x32xf32>
    %22 = arith.truncf %21 : vector<8x32xf32> to vector<8x32xbf16>
    %c0_17 = arith.constant 0 : index
    %c0_18 = arith.constant 0 : index
    %23 = vector.load %arg8[%c0_17, %c0_18] : memref<32x1xbf16, #tpu.memory_space<vmem>>, vector<32x1xbf16>
    %cst_19 = arith.constant dense<0.000000e+00> : vector<8x1xf32>
    %24 = tpu.matmul %22, %23, %cst_19 {dimension_numbers = #tpu.dot_dimension_numbers<[1], [0], [0], [1], [0, 0, 1, 1], [], []>} : vector<8x32xbf16>, vector<32x1xbf16>, vector<8x1xf32> -> vector<8x1xf32>
    %c0_20 = arith.constant 0 : index
    %c0_21 = arith.constant 0 : index
    %25 = vector.load %arg9[%c0_20, %c0_21] : memref<1x1xf32, #tpu.memory_space<vmem>>, vector<1x1xf32>
    %26 = vector.broadcast %25 : vector<1x1xf32> to vector<8x1xf32>
    %27 = arith.addf %24, %26 : vector<8x1xf32>
    %c0_22 = arith.constant 0 : index
    %c0_23 = arith.constant 0 : index
    %28 = vector.load %arg10[%c0_22, %c0_23] : memref<8x1xf32, #tpu.memory_space<vmem>>, vector<8x1xf32>
    tpu.vector_store %arg10[%c0_22, %c0_23], %27 {strides = array<i32>} : memref<8x1xf32, #tpu.memory_space<vmem>>, vector<8x1xf32>,
    return
  }
  func.func @transform_0(%arg0: i32) -> (i32, i32) {
    %c0_i32 = arith.constant 0 : i32
    %c0_i32_0 = arith.constant 0 : i32
    return %arg0, %c0_i32 : i32, i32
  }
  func.func @transform_1(%arg0: i32) -> (i32, i32) {
    %c0_i32 = arith.constant 0 : i32
    %c0_i32_0 = arith.constant 0 : i32
    return %arg0, %c0_i32 : i32, i32
  }
  func.func @transform_2(%arg0: i32) -> (i32, i32) {
    %c0_i32 = arith.constant 0 : i32
    %c0_i32_0 = arith.constant 0 : i32
    %c0_i32_1 = arith.constant 0 : i32
    return %c0_i32, %c0_i32_0 : i32, i32
  }
  func.func @transform_3(%arg0: i32) -> (i32, i32) {
    %c0_i32 = arith.constant 0 : i32
    %c0_i32_0 = arith.constant 0 : i32
    %c0_i32_1 = arith.constant 0 : i32
    return %c0_i32, %c0_i32_0 : i32, i32
  }
  func.func @transform_4(%arg0: i32) -> (i32, i32) {
    %c0_i32 = arith.constant 0 : i32
    %c0_i32_0 = arith.constant 0 : i32
    %c0_i32_1 = arith.constant 0 : i32
    return %c0_i32, %c0_i32_0 : i32, i32
  }
  func.func @transform_5(%arg0: i32) -> (i32, i32) {
    %c0_i32 = arith.constant 0 : i32
    %c0_i32_0 = arith.constant 0 : i32
    %c0_i32_1 = arith.constant 0 : i32
    return %c0_i32, %c0_i32_0 : i32, i32
  }
  func.func @transform_6(%arg0: i32) -> (i32, i32) {
    %c0_i32 = arith.constant 0 : i32
    %c0_i32_0 = arith.constant 0 : i32
    %c0_i32_1 = arith.constant 0 : i32
    return %c0_i32, %c0_i32_0 : i32, i32
  }
  func.func @transform_7(%arg0: i32) -> (i32, i32) {
    %c0_i32 = arith.constant 0 : i32
    %c0_i32_0 = arith.constant 0 : i32
    %c0_i32_1 = arith.constant 0 : i32
    return %c0_i32, %c0_i32_0 : i32, i32
  }
  func.func @transform_8(%arg0: i32) -> (i32, i32) {
    %c0_i32 = arith.constant 0 : i32
    %c0_i32_0 = arith.constant 0 : i32
    %c0_i32_1 = arith.constant 0 : i32
    return %c0_i32, %c0_i32_0 : i32, i32
  }
  func.func @transform_9(%arg0: i32) -> (i32, i32) {
    %c0_i32 = arith.constant 0 : i32
    %c0_i32_0 = arith.constant 0 : i32
    return %arg0, %c0_i32 : i32, i32
  }
}

</mosaic_0001>

<llo_original>
// kernel: critic_forward.1
$region0: #{critic_forward.1}
  #allocation0 [shape = 'u32[]', space=smem, size = 0x4, offset = 0x4, fixed_abs, tag = 'smem constant byte address 0x4 - core index']
  #allocation1 [shape = 'u32[144,128]{1,0:T(1,128)}', space=vmem, size = 0x12000, scoped, tag = 'internal scratch']
  #allocation2 [shape = 'f32[1,1]{1,0:T(1,128)S(1)}', space=vmem, size = 0x200, scoped, tag = 'scoped memory for critic_forward.1']
  %s0 = inlined_call_operand.vmem [shape: f32[8,6], index: 0, kind: input, shape index: {}]
  %s1 = inlined_call_operand.vmem [shape: f32[8,2], index: 1, kind: input, shape index: {}]
  %s2 = inlined_call_operand.vmem [shape: bf16[6,32], index: 2, kind: input, shape index: {}]
  %s3 = inlined_call_operand.vmem [shape: bf16[2,32], index: 3, kind: input, shape index: {}]
  %s4 = inlined_call_operand.vmem [shape: f32[1,32], index: 4, kind: input, shape index: {}]
  %s5 = inlined_call_operand.vmem [shape: bf16[32,32], index: 5, kind: input, shape index: {}]
  %s6 = inlined_call_operand.vmem [shape: f32[1,32], index: 6, kind: input, shape index: {}]
  %s7 = inlined_call_operand.vmem [shape: bf16[32,1], index: 7, kind: input, shape index: {}]
  %s8 = inlined_call_operand.<no memory space> [shape: f32[1,1], index: 8, kind: input, shape index: {}]
  %s9 = inlined_call_operand.vmem [shape: f32[8,1], index: 9, kind: output, shape index: {}]
  %s10 = sld [smem:[#allocation0]]
  $region46: #{critic_forward.1} parent=0
    _
  %s12 = ssub.s32 1, %s10
  %s13 = scalar_select 0, %s12, %s10
  %v14 = vstv %s8
  %15 = vst [vmem:[#allocation2] sm:$0x1] %v14
  // Predicated region
  $region2: #{critic_forward.1} parent=0 // pred_check
    _
  $region3: #{critic_forward.1} parent=0 // pred_check_branch
    %17 = sbr.rel (0) target = $region5
  $region4: #{critic_forward.1} parent=0 // pred_region
    _
  $region5: #{critic_forward.1} parent=0 // pred_fallthru
    _
  // Predicated region
  $region6: #{critic_forward.1} parent=0 // pred_check
    _
  $region7: #{critic_forward.1} parent=0 // pred_check_branch
    %19 = sbr.rel (0) target = $region9
  $region8: #{critic_forward.1} parent=0 // pred_region
    _
  $region9: #{critic_forward.1} parent=0 // pred_fallthru
    _
  // Predicated region
  $region10: #{critic_forward.1} parent=0 // pred_check
    _
  $region11: #{critic_forward.1} parent=0 // pred_check_branch
    %21 = sbr.rel (0) target = $region13
  $region12: #{critic_forward.1} parent=0 // pred_region
    _
  $region13: #{critic_forward.1} parent=0 // pred_fallthru
    _
  // Predicated region
  $region14: #{critic_forward.1} parent=0 // pred_check
    _
  $region15: #{critic_forward.1} parent=0 // pred_check_branch
    %23 = sbr.rel (0) target = $region17
  $region16: #{critic_forward.1} parent=0 // pred_region
    _
  $region17: #{critic_forward.1} parent=0 // pred_fallthru
    _
  // Predicated region
  $region18: #{critic_forward.1} parent=0 // pred_check
    _
  $region19: #{critic_forward.1} parent=0 // pred_check_branch
    %25 = sbr.rel (0) target = $region21
  $region20: #{critic_forward.1} parent=0 // pred_region
    _
  $region21: #{critic_forward.1} parent=0 // pred_fallthru
    _
  // Predicated region
  $region22: #{critic_forward.1} parent=0 // pred_check
    _
  $region23: #{critic_forward.1} parent=0 // pred_check_branch
    %27 = sbr.rel (0) target = $region25
  $region24: #{critic_forward.1} parent=0 // pred_region
    _
  $region25: #{critic_forward.1} parent=0 // pred_fallthru
    _
  // Predicated region
  $region26: #{critic_forward.1} parent=0 // pred_check
    _
  $region27: #{critic_forward.1} parent=0 // pred_check_branch
    %29 = sbr.rel (0) target = $region29
  $region28: #{critic_forward.1} parent=0 // pred_region
    _
  $region29: #{critic_forward.1} parent=0 // pred_fallthru
    _
  // Predicated region
  $region30: #{critic_forward.1} parent=0 // pred_check
    _
  $region31: #{critic_forward.1} parent=0 // pred_check_branch
    %31 = sbr.rel (0) target = $region33
  $region32: #{critic_forward.1} parent=0 // pred_region
    _
  $region33: #{critic_forward.1} parent=0 // pred_fallthru
    _
  // Predicated region
  $region34: #{critic_forward.1} parent=0 // pred_check
    _
  $region35: #{critic_forward.1} parent=0 // pred_check_branch
    %33 = sbr.rel (0) target = $region37
  $region36: #{critic_forward.1} parent=0 // pred_region
    _
  $region37: #{critic_forward.1} parent=0 // pred_fallthru
    _
  %v35 = vld [vmem:[%s0] sm:$0xff]
  %v36 = vpack.c.bf16 %v35, %v35
  %v37 = vld [vmem:[%s1] sm:$0xff]
  %v38 = vpack.c.bf16 %v37, %v37
  %v39 = vld [vmem:[%s2] sm:$0x7]
  %v40 = vld [vmem:[%s3] sm:$0x1]
  %vm41 = vcmask 15360
  %v43 = vsel %vm41, %v38, 0
  %vm45 = vcmask 1040384
  %v47 = vsel %vm45, %v40, 0
  %49 = vmatprep.subr.bf16.mxu0 0
  %50 = vmatpush1.bf16.msra.mxu0 %v47
  %51 = vmatprep.subr.bf16.mxu0 0
  %52 = vmatpush1.bf16.msra.mxu0 0
  %53 = vmatprep.subr.bf16.mxu0 0
  %54 = vmatpush1.bf16.msra.mxu0 0
  %55 = vmatprep.subr.bf16.mxu0 0
  %56 = vmatpush1.bf16.msra.mxu0 0
  %57 = vmatprep.subr.bf16.mxu0 0
  %58 = vmatpush1.bf16.msra.mxu0 0
  %59 = vmatprep.subr.bf16.mxu0 0
  %60 = vmatpush1.bf16.msra.mxu0 0
  %61 = vmatprep.subr.bf16.mxu0 0
  %62 = vmatpush1.bf16.msra.mxu0 0
  %63 = vmatprep.subr.bf16.mxu0 0
  %64 = vmatpush1.bf16.msra.mxu0 0
  %65 = vmatprep.subr.bf16.mxu0 0
  %66 = vmatpush1.bf16.msra.mxu0 0
  %67 = vmatprep.subr.bf16.mxu0 0
  %68 = vmatpush1.bf16.msra.mxu0 0
  %69 = vmatprep.subr.bf16.mxu0 0
  %70 = vmatpush1.bf16.msra.mxu0 0
  %71 = vmatprep.subr.bf16.mxu0 0
  %72 = vmatpush1.bf16.msra.mxu0 0
  %73 = vmatprep.subr.bf16.mxu0 0
  %74 = vmatpush1.bf16.msra.mxu0 0
  %75 = vmatprep.subr.bf16.mxu0 0
  %76 = vmatpush1.bf16.msra.mxu0 0
  %77 = vmatprep.subr.bf16.mxu0 0
  %78 = vmatpush1.bf16.msra.mxu0 0
  %79 = vmatprep.subr.bf16.mxu0 0
  %80 = vmatpush1.bf16.msra.mxu0 0
  %81 = vmatprep.mubr.bf16.mxu0 0
  %82 = vmatmul.mubr.bf16.gmra.mrb[0].mxu0 %v43
  %v83 = vpop.f32.mrb[0].mxu0
  %v84 = vadd.f32 0.0, %v83
  %v85 = vpop.f32.mrb[0].mxu0
  %v86 = vpop.f32.mrb[0].mxu0
  %v87 = vpop.f32.mrb[0].mxu0
  %88 = vdwg.mxu0
  %vm89 = vcmask 48128
  %v91 = vsel %vm89, %v36, 0
  %vm93 = vcmask 1042432
  %v95 = vsel %vm93, %v39, 0
  %97 = vmatprep.subr.bf16.mxu0 0
  %98 = vmatpush1.bf16.msra.mxu0 %v95
  %99 = vmatprep.subr.bf16.mxu0 0
  %100 = vmatpush1.bf16.msra.mxu0 0
  %101 = vmatprep.subr.bf16.mxu0 0
  %102 = vmatpush1.bf16.msra.mxu0 0
  %103 = vmatprep.subr.bf16.mxu0 0
  %104 = vmatpush1.bf16.msra.mxu0 0
  %105 = vmatprep.subr.bf16.mxu0 0
  %106 = vmatpush1.bf16.msra.mxu0 0
  %107 = vmatprep.subr.bf16.mxu0 0
  %108 = vmatpush1.bf16.msra.mxu0 0
  %109 = vmatprep.subr.bf16.mxu0 0
  %110 = vmatpush1.bf16.msra.mxu0 0
  %111 = vmatprep.subr.bf16.mxu0 0
  %112 = vmatpush1.bf16.msra.mxu0 0
  %113 = vmatprep.subr.bf16.mxu0 0
  %114 = vmatpush1.bf16.msra.mxu0 0
  %115 = vmatprep.subr.bf16.mxu0 0
  %116 = vmatpush1.bf16.msra.mxu0 0
  %117 = vmatprep.subr.bf16.mxu0 0
  %118 = vmatpush1.bf16.msra.mxu0 0
  %119 = vmatprep.subr.bf16.mxu0 0
  %120 = vmatpush1.bf16.msra.mxu0 0
  %121 = vmatprep.subr.bf16.mxu0 0
  %122 = vmatpush1.bf16.msra.mxu0 0
  %123 = vmatprep.subr.bf16.mxu0 0
  %124 = vmatpush1.bf16.msra.mxu0 0
  %125 = vmatprep.subr.bf16.mxu0 0
  %126 = vmatpush1.bf16.msra.mxu0 0
  %127 = vmatprep.subr.bf16.mxu0 0
  %128 = vmatpush1.bf16.msra.mxu0 0
  %129 = vmatprep.mubr.bf16.mxu0 0
  %130 = vmatmul.mubr.bf16.gmra.mrb[0].mxu0 %v91
  %v131 = vpop.f32.mrb[0].mxu0
  %v132 = vadd.f32 %v84, %v131
  %v133 = vpop.f32.mrb[0].mxu0
  %v134 = vpop.f32.mrb[0].mxu0
  %v135 = vpop.f32.mrb[0].mxu0
  %136 = vdwg.mxu0
  %v137 = vld [vmem:[%s4] sm:$0x1]
  %v139 = vlaneseq
  %v140 = vshrl.u32 %v139, 7
  %v141 = vsub.s32 0, %v140
  %v142 = vrot.slane %v137, %v141
  %v144 = vadd.f32 %v132, %v142
  %v145 = vmax.f32 %v144, 0.0
  %v146 = vpack.c.bf16 %v145, %v145
  %v147 = vld [vmem:[%s5] sm:$0xf]
  %v148 = vld [vmem:[%s5 + $0x4] sm:$0xf]
  %v149 = vld [vmem:[%s5 + $0x8] sm:$0xf]
  %v150 = vld [vmem:[%s5 + $0xc] sm:$0xf]
  %v151 = vld [vmem:[%s6] sm:$0x1]
  %v153 = vlaneseq
  %v154 = vshrl.u32 %v153, 7
  %v155 = vsub.s32 0, %v154
  %v156 = vrot.slane %v151, %v155
  %v162 = vunpack.c.l.b16 %v147
  %v163 = vunpack.c.l.b16 %v148
  %v164 = vunpack.c.l.b16 %v149
  %v165 = vunpack.c.l.b16 %v150
  %v166 = vpack.c.b16 %v163, %v162
  %v167 = vpack.c.b16 %v165, %v164
  %vm170 = vcmask 261120
  %v172 = vsel %vm170, %v146, 0
  %174 = vmatprep.subr.bf16.mxu0 0
  %175 = vmatpush1.bf16.msra.mxu0 %v166
  %176 = vmatprep.subr.bf16.mxu0 0
  %177 = vmatpush1.bf16.msra.mxu0 %v167
  %178 = vmatprep.subr.bf16.mxu0 0
  %179 = vmatpush1.bf16.msra.mxu0 0
  %180 = vmatprep.subr.bf16.mxu0 0
  %181 = vmatpush1.bf16.msra.mxu0 0
  %182 = vmatprep.subr.bf16.mxu0 0
  %183 = vmatpush1.bf16.msra.mxu0 0
  %184 = vmatprep.subr.bf16.mxu0 0
  %185 = vmatpush1.bf16.msra.mxu0 0
  %186 = vmatprep.subr.bf16.mxu0 0
  %187 = vmatpush1.bf16.msra.mxu0 0
  %188 = vmatprep.subr.bf16.mxu0 0
  %189 = vmatpush1.bf16.msra.mxu0 0
  %190 = vmatprep.subr.bf16.mxu0 0
  %191 = vmatpush1.bf16.msra.mxu0 0
  %192 = vmatprep.subr.bf16.mxu0 0
  %193 = vmatpush1.bf16.msra.mxu0 0
  %194 = vmatprep.subr.bf16.mxu0 0
  %195 = vmatpush1.bf16.msra.mxu0 0
  %196 = vmatprep.subr.bf16.mxu0 0
  %197 = vmatpush1.bf16.msra.mxu0 0
  %198 = vmatprep.subr.bf16.mxu0 0
  %199 = vmatpush1.bf16.msra.mxu0 0
  %200 = vmatprep.subr.bf16.mxu0 0
  %201 = vmatpush1.bf16.msra.mxu0 0
  %202 = vmatprep.subr.bf16.mxu0 0
  %203 = vmatpush1.bf16.msra.mxu0 0
  %204 = vmatprep.subr.bf16.mxu0 0
  %205 = vmatpush1.bf16.msra.mxu0 0
  %206 = vmatprep.mubr.bf16.mxu0 0
  %207 = vmatmul.mubr.bf16.gmra.mrb[0].mxu0 %v172
  %v208 = vpop.f32.mrb[0].mxu0
  %v209 = vadd.f32 %v156, %v208
  %v210 = vpop.f32.mrb[0].mxu0
  %v211 = vpop.f32.mrb[0].mxu0
  %v212 = vpop.f32.mrb[0].mxu0
  %213 = vdwg.mxu0
  %v214 = vmax.f32 %v209, 0.0
  %v215 = vpack.c.bf16 %v214, %v214
  %v216 = vld [vmem:[%s7] sm:$0xf]
  %v217 = vld [vmem:[%s7 + $0x4] sm:$0xf]
  %v218 = vld [vmem:[%s7 + $0x8] sm:$0xf]
  %v219 = vld [vmem:[%s7 + $0xc] sm:$0xf]
  %v220 = vld [vmem:[#allocation2] sm:$0x1]
  %v222 = vlaneseq
  %v223 = vshrl.u32 %v222, 7
  %v224 = vsub.s32 0, %v223
  %v225 = vrot.slane %v220, %v224
  %v231 = vunpack.c.l.b16 %v216
  %v232 = vunpack.c.l.b16 %v217
  %v233 = vunpack.c.l.b16 %v218
  %v234 = vunpack.c.l.b16 %v219
  %v235 = vpack.c.b16 %v232, %v231
  %v236 = vpack.c.b16 %v234, %v233
  %v240 = vsel %vm170, %v215, 0
  %242 = vmatprep.subr.bf16.mxu0 0
  %243 = vmatpush1.bf16.msra.mxu0 %v235
  %244 = vmatprep.subr.bf16.mxu0 0
  %245 = vmatpush1.bf16.msra.mxu0 %v236
  %246 = vmatprep.subr.bf16.mxu0 0
  %247 = vmatpush1.bf16.msra.mxu0 0
  %248 = vmatprep.subr.bf16.mxu0 0
  %249 = vmatpush1.bf16.msra.mxu0 0
  %250 = vmatprep.subr.bf16.mxu0 0
  %251 = vmatpush1.bf16.msra.mxu0 0
  %252 = vmatprep.subr.bf16.mxu0 0
  %253 = vmatpush1.bf16.msra.mxu0 0
  %254 = vmatprep.subr.bf16.mxu0 0
  %255 = vmatpush1.bf16.msra.mxu0 0
  %256 = vmatprep.subr.bf16.mxu0 0
  %257 = vmatpush1.bf16.msra.mxu0 0
  %258 = vmatprep.subr.bf16.mxu0 0
  %259 = vmatpush1.bf16.msra.mxu0 0
  %260 = vmatprep.subr.bf16.mxu0 0
  %261 = vmatpush1.bf16.msra.mxu0 0
  %262 = vmatprep.subr.bf16.mxu0 0
  %263 = vmatpush1.bf16.msra.mxu0 0
  %264 = vmatprep.subr.bf16.mxu0 0
  %265 = vmatpush1.bf16.msra.mxu0 0
  %266 = vmatprep.subr.bf16.mxu0 0
  %267 = vmatpush1.bf16.msra.mxu0 0
  %268 = vmatprep.subr.bf16.mxu0 0
  %269 = vmatpush1.bf16.msra.mxu0 0
  %270 = vmatprep.subr.bf16.mxu0 0
  %271 = vmatpush1.bf16.msra.mxu0 0
  %272 = vmatprep.subr.bf16.mxu0 0
  %273 = vmatpush1.bf16.msra.mxu0 0
  %274 = vmatprep.mubr.bf16.mxu0 0
  %275 = vmatmul.mubr.bf16.gmra.mrb[0].mxu0 %v240
  %v276 = vpop.f32.mrb[0].mxu0
  %v277 = vadd.f32 %v225, %v276
  %v278 = vpop.f32.mrb[0].mxu0
  %v279 = vpop.f32.mrb[0].mxu0
  %v280 = vpop.f32.mrb[0].mxu0
  %281 = vdwg.mxu0
  %vm282 = vcmask 7168
  %283 = vst.msk [vmem:[%s9] sm:$0xff] %vm282, %v277
  // Predicated region
  $region38: #{critic_forward.1} parent=0 // pred_check
    _
  $region39: #{critic_forward.1} parent=0 // pred_check_branch
    %285 = sbr.rel (0) target = $region41
  $region40: #{critic_forward.1} parent=0 // pred_region
    _
  $region41: #{critic_forward.1} parent=0 // pred_fallthru
    _
  // Predicated region
  $region42: #{critic_forward.1} parent=0 // pred_check
    _
  $region43: #{critic_forward.1} parent=0 // pred_check_branch
    %287 = sbr.rel (0) target = $region45
  $region44: #{critic_forward.1} parent=0 // pred_region
    _
  $region45: #{critic_forward.1} parent=0 // pred_fallthru
    _

</llo_original>
